<compile_context>
chip_gen: v5e
topology: v5e:2x2
jax: 0.10.0
libtpu: 0.0.40
codegen_flags: <defaults>
</compile_context>

<pallas_src>
import functools

import jax
import jax.numpy as jnp
from jax import lax
from jax.experimental import pallas as pl
from jax.experimental.pallas import tpu as pltpu


def _round_up(x, m):
    return ((x + m - 1) // m) * m


def _model_kernel(x_ref, w_ref, b_ref, out_ref, hidden_ref, *, negative_slope):
    x = x_ref[...]                         # [TILE_B, F_pad]
    w = w_ref[...]                         # [F_pad, H_pad]

    # hidden = einsum('bf,fh->bh')  -> MXU, f32 accumulation.
    hidden = jnp.dot(x, w, preferred_element_type=jnp.float32)   # [TILE_B, H_pad]

    # out = einsum('bh,fh->bf') == hidden @ W.T without materializing W.T:
    # contract dim 1 of hidden with dim 1 of w (NT matmul).
    out = lax.dot_general(
        hidden, w,
        dimension_numbers=(((1,), (1,)), ((), ())),
        preferred_element_type=jnp.float32)                      # [TILE_B, F_pad]

    out = out + b_ref[...]                 # b_ref is [1, F_pad] -> row broadcast
    # leaky relu: relu(x) - slope*relu(-x)  ==  where(x >= 0, x, slope*x)
    out = jnp.where(out >= 0.0, out, negative_slope * out)

    out_ref[...] = out.astype(out_ref.dtype)
    hidden_ref[...] = hidden.astype(hidden_ref.dtype)


def model_forward(features, W, b_final, negative_slope=0.0):
    """features: [..., n_features]; W: [n_features, n_hidden]; b_final: [n_features]."""
    n_features, n_hidden = W.shape
    lead_shape = features.shape[:-1]

    x2d = features.reshape((-1, n_features)).astype(jnp.float32)
    batch = x2d.shape[0]

    # Lane-dense padded layout (last dim multiple of 128).
    F_pad = _round_up(n_features, 128)
    H_pad = _round_up(n_hidden, 128)

    # Batch tile: multiple of 8, capped at 512, shrunk to a ~32 MiB VMEM budget
    # (double-buffered x/out/hidden tiles + resident W + bias) so it fits every
    # generation (v7x has only 64 MiB physical VMEM).
    TILE_B = min(_round_up(batch, 8), 512)

    def _tile_bytes(tb):
        io_tiles = tb * F_pad * 4 * 2 + tb * H_pad * 4   # x, out, hidden
        return 2 * io_tiles + F_pad * H_pad * 4 + F_pad * 4  # 2x double buffering

    vmem_budget = 32 * 1024 * 1024
    while TILE_B > 8 and _tile_bytes(TILE_B) > vmem_budget:
        TILE_B //= 2
    TILE_B = max(8, _round_up(TILE_B, 8))

    B_pad = _round_up(batch, TILE_B)

    # Zero-pad everything so padded lanes / rows compute to exactly 0.
    x_pad = jnp.zeros((B_pad, F_pad), jnp.float32).at[:batch, :n_features].set(x2d)
    W_pad = jnp.zeros((F_pad, H_pad), jnp.float32).at[:n_features, :n_hidden].set(
        W.astype(jnp.float32))
    b_pad = jnp.zeros((1, F_pad), jnp.float32).at[0, :n_features].set(
        b_final.astype(jnp.float32))

    kernel = functools.partial(_model_kernel,
                               negative_slope=float(negative_slope))

    out_p, hidden_p = pl.pallas_call(
        kernel,
        grid=(B_pad // TILE_B,),
        out_shape=(
            jax.ShapeDtypeStruct((B_pad, F_pad), jnp.float32),
            jax.ShapeDtypeStruct((B_pad, H_pad), jnp.float32),
        ),
        in_specs=[
            pl.BlockSpec((TILE_B, F_pad), lambda i: (i, 0)),
            pl.BlockSpec((F_pad, H_pad), lambda i: (0, 0)),   # W resident
            pl.BlockSpec((1, F_pad), lambda i: (0, 0)),       # bias resident
        ],
        out_specs=(
            pl.BlockSpec((TILE_B, F_pad), lambda i: (i, 0)),
            pl.BlockSpec((TILE_B, H_pad), lambda i: (i, 0)),
        ),
        compiler_params=pltpu.CompilerParams(
            dimension_semantics=("parallel",),
            vmem_limit_bytes=48 * 1024 * 1024),
    )(x_pad, W_pad, b_pad)

    out = out_p[:batch, :n_features].reshape(lead_shape + (n_features,))
    hidden = hidden_p[:batch, :n_hidden].reshape(lead_shape + (n_hidden,))
    return out, hidden


def reference_forward(features, W, b_final, negative_slope=0.0):
    hidden = jnp.einsum('...f,fh->...h', features, W)
    out = jnp.einsum('...h,fh->...f', hidden, W)
    out = out + b_final
    out = jnp.maximum(out, 0.0) - negative_slope * jnp.maximum(-out, 0.0)
    return out, hidden


if __name__ == "__main__":
    n_features = 32
    n_hidden = 2
    negative_slope = 0.05

    key = jax.random.PRNGKey(0)
    k_w, k_x1, k_x2 = jax.random.split(key, 3)

    # xavier_normal_ init: std = sqrt(2 / (fan_in + fan_out))
    xavier_std = (2.0 / (n_features + n_hidden)) ** 0.5
    W = jax.random.normal(k_w, (n_features, n_hidden), dtype=jnp.float32) * xavier_std
    b_final = jnp.zeros((n_features,), dtype=jnp.float32)

    # 2-D batch and an arbitrary-leading-dims ('...') case.
    feats_2d = jax.random.uniform(k_x1, (8, n_features), dtype=jnp.float32)
    feats_3d = jax.random.uniform(k_x2, (2, 8, n_features), dtype=jnp.float32)

    for feats in (feats_2d, feats_3d):
        out, hidden = model_forward(feats, W, b_final, negative_slope)
        out = jax.block_until_ready(out)
        hidden = jax.block_until_ready(hidden)

        out_ref, hidden_ref = reference_forward(feats, W, b_final, negative_slope)
        assert out.shape == out_ref.shape and hidden.shape == hidden_ref.shape
        assert jnp.allclose(out, out_ref, atol=1e-5, rtol=1e-5), "out mismatch"
        assert jnp.allclose(hidden, hidden_ref, atol=1e-5, rtol=1e-5), "hidden mismatch"

    print("KERNEL_OK")
</pallas_src>

<mosaic_0001>
module attributes {stable_mosaic.version = 11 : i64} {
  func.func @_model_kernel(%arg0: i32, %arg1: memref<8x128xf32, #tpu.memory_space<vmem>>, %arg2: memref<128x128xf32, #tpu.memory_space<vmem>>, %arg3: memref<1x128xf32, #tpu.memory_space<vmem>>, %arg4: memref<8x128xf32, #tpu.memory_space<vmem>>, %arg5: memref<8x128xf32, #tpu.memory_space<vmem>>) attributes {dimension_semantics = [#tpu.dimension_semantics<parallel>], iteration_bounds = array<i64: 1>, scalar_prefetch = 0 : i64, scratch_operands = 0 : i64, tpu.core_type = #tpu.core_type<tc>, window_params = [{transform_indices = @transform_0, window_bounds = array<i64: 8, 128>}, {pipeline_mode = #tpu.pipeline_mode<synchronous>, transform_indices = @transform_1, window_bounds = array<i64: 128, 128>}, {pipeline_mode = #tpu.pipeline_mode<synchronous>, transform_indices = @transform_2, window_bounds = array<i64: 1, 128>}, {transform_indices = @transform_3, window_bounds = array<i64: 8, 128>}, {transform_indices = @transform_4, window_bounds = array<i64: 8, 128>}]} {
    %c0 = arith.constant 0 : index
    %c0_0 = arith.constant 0 : index
    %0 = vector.load %arg1[%c0, %c0_0] : memref<8x128xf32, #tpu.memory_space<vmem>>, vector<8x128xf32>
    %c0_1 = arith.constant 0 : index
    %c0_2 = arith.constant 0 : index
    %1 = vector.load %arg2[%c0_1, %c0_2] : memref<128x128xf32, #tpu.memory_space<vmem>>, vector<128x128xf32>
    %cst = arith.constant dense<0.000000e+00> : vector<8x128xf32>
    %2 = tpu.matmul %0, %1, %cst {dimension_numbers = #tpu.dot_dimension_numbers<[1], [0], [0], [1], [0, 0, 1, 1], [], []>} : vector<8x128xf32>, vector<128x128xf32>, vector<8x128xf32> -> vector<8x128xf32>
    %cst_3 = arith.constant dense<0.000000e+00> : vector<8x128xf32>
    %3 = tpu.matmul %2, %1, %cst_3 {dimension_numbers = #tpu.dot_dimension_numbers<[1], [1], [0], [0], [0, 0, 1, 0], [], []>} : vector<8x128xf32>, vector<128x128xf32>, vector<8x128xf32> -> vector<8x128xf32>
    %c0_4 = arith.constant 0 : index
    %c0_5 = arith.constant 0 : index
    %4 = vector.load %arg3[%c0_4, %c0_5] : memref<1x128xf32, #tpu.memory_space<vmem>>, vector<1x128xf32>
    %5 = vector.broadcast %4 : vector<1x128xf32> to vector<8x128xf32>
    %6 = arith.addf %3, %5 : vector<8x128xf32>
    %cst_6 = arith.constant 0.000000e+00 : f32
    %7 = vector.broadcast %cst_6 : f32 to vector<8x128xf32>
    %8 = arith.cmpf oge, %6, %7 : vector<8x128xf32>
    %cst_7 = arith.constant 5.000000e-02 : f32
    %9 = vector.broadcast %cst_7 : f32 to vector<8x128xf32>
    %10 = arith.mulf %9, %6 : vector<8x128xf32>
    %11 = arith.select %8, %6, %10 : vector<8x128xi1>, vector<8x128xf32>
    %c0_8 = arith.constant 0 : index
    %c0_9 = arith.constant 0 : index
    %12 = vector.load %arg4[%c0_8, %c0_9] : memref<8x128xf32, #tpu.memory_space<vmem>>, vector<8x128xf32>
    tpu.vector_store %arg4[%c0_8, %c0_9], %11 {strides = array<i32>} : memref<8x128xf32, #tpu.memory_space<vmem>>, vector<8x128xf32>,
    %c0_10 = arith.constant 0 : index
    %c0_11 = arith.constant 0 : index
    %13 = vector.load %arg5[%c0_10, %c0_11] : memref<8x128xf32, #tpu.memory_space<vmem>>, vector<8x128xf32>
    tpu.vector_store %arg5[%c0_10, %c0_11], %2 {strides = array<i32>} : memref<8x128xf32, #tpu.memory_space<vmem>>, vector<8x128xf32>,
    return
  }
  func.func @transform_0(%arg0: i32) -> (i32, i32) {
    %c0_i32 = arith.constant 0 : i32
    %c0_i32_0 = arith.constant 0 : i32
    return %arg0, %c0_i32 : i32, i32
  }
  func.func @transform_1(%arg0: i32) -> (i32, i32) {
    %c0_i32 = arith.constant 0 : i32
    %c0_i32_0 = arith.constant 0 : i32
    %c0_i32_1 = arith.constant 0 : i32
    return %c0_i32, %c0_i32_0 : i32, i32
  }
  func.func @transform_2(%arg0: i32) -> (i32, i32) {
    %c0_i32 = arith.constant 0 : i32
    %c0_i32_0 = arith.constant 0 : i32
    %c0_i32_1 = arith.constant 0 : i32
    return %c0_i32, %c0_i32_0 : i32, i32
  }
  func.func @transform_3(%arg0: i32) -> (i32, i32) {
    %c0_i32 = arith.constant 0 : i32
    %c0_i32_0 = arith.constant 0 : i32
    return %arg0, %c0_i32 : i32, i32
  }
  func.func @transform_4(%arg0: i32) -> (i32, i32) {
    %c0_i32 = arith.constant 0 : i32
    %c0_i32_0 = arith.constant 0 : i32
    return %arg0, %c0_i32 : i32, i32
  }
}

</mosaic_0001>

<llo_original>
// kernel: tpu_custom_call.1
$region0: #{tpu_custom_call.1}
  #allocation0 [shape = 'u32[]', space=smem, size = 0x4, offset = 0x4, fixed_abs, tag = 'smem constant byte address 0x4 - core index']
  #allocation1 [shape = 'u32[72,128]{1,0:T(1,128)}', space=vmem, size = 0x9000, scoped, tag = 'internal scratch']
  %s0 = inlined_call_operand.hbm [shape: f32[8,128], index: 0, kind: input, shape index: {}]
  %s1 = inlined_call_operand.hbm [shape: f32[128,128], index: 1, kind: input, shape index: {}]
  %s2 = inlined_call_operand.vmem [shape: f32[1,128], index: 2, kind: input, shape index: {}]
  %s3 = inlined_call_operand.hbm [shape: f32[8,128], index: 3, kind: output, shape index: {0}]
  %s4 = inlined_call_operand.hbm [shape: f32[8,128], index: 4, kind: output, shape index: {1}]
  %5 = xla_tuple %s3, %s4
  %s6 = sld [smem:[#allocation0]]
  $region38: #{tpu_custom_call.1} parent=0
    _
  %s8 = ssub.s32 1, %s6
  %s9 = scalar_select 0, %s8, %s6
  $region1: #{tpu_custom_call.1} parent=0
    #allocation2 [shape = 'u8[4096]{0}', space=vmem, size = 0x1000, scoped, tag = 'input window, operand 0, single buffered']
    #allocation3 [shape = 's32[1]{0}', space=sflag, size = 0x4, scoped, tag = 'scoped memory for tpu_custom_call.1']
    #allocation4 [shape = 's32[1]{0}', space=sflag, size = 0x4, scoped, tag = 'scoped memory for tpu_custom_call.1']
    #allocation5 [shape = 'u8[65536]{0}', space=vmem, size = 0x10000, scoped, tag = 'input window, operand 1, single buffered']
    #allocation6 [shape = 's32[1]{0}', space=sflag, size = 0x4, scoped, tag = 'scoped memory for tpu_custom_call.1']
    #allocation7 [shape = 'u8[4096]{0}', space=vmem, size = 0x1000, scoped, tag = 'output window, operand 0, single buffered']
    #allocation8 [shape = 'u8[4096]{0}', space=vmem, size = 0x1000, scoped, tag = 'output window, operand 1, single buffered']
    #allocation9 [shape = 's32[1]{0}', space=sflag, size = 0x4, scoped, tag = 'scoped memory for tpu_custom_call.1']
    %10 = vsyncpa [#allocation3], 0
    %11 = vsyncpa [#allocation6], 0
    %12 = vsyncpa [#allocation4], 0
    %13 = vsyncpa [#allocation9], 0
    // Predicated region
    $region2: #{tpu_custom_call.1} parent=1 // pred_check
      _
    $region3: #{tpu_custom_call.1} parent=1 // pred_check_branch
      %15 = sbr.rel (0) target = $region5
    $region4: #{tpu_custom_call.1} parent=1 // pred_region
      %17 = vsyncadd [#allocation3], 0
      %s19 = sshll.u32 %s0, 4
      %s20 = int_to_ptr.hbm [resolvable:$true] %s19
      %s21 = sshll.u32 [#allocation2], 4
      %s22 = int_to_ptr.vmem [resolvable:$true] %s21
      %24 = dma.hbm_to_vmem [thread:$0]  %s20, 128, %s22, [#allocation3]
    $region5: #{tpu_custom_call.1} parent=1 // pred_fallthru
      _
    // Predicated region
    $region6: #{tpu_custom_call.1} parent=1 // pred_check
      _
    $region7: #{tpu_custom_call.1} parent=1 // pred_check_branch
      %26 = sbr.rel (0) target = $region9
    $region8: #{tpu_custom_call.1} parent=1 // pred_region
      %28 = vsyncadd [#allocation6], 0
      %s29 = sshll.u32 %s1, 4
      %s30 = int_to_ptr.hbm [resolvable:$true] %s29
      %s31 = sshll.u32 [#allocation5], 4
      %s32 = int_to_ptr.vmem [resolvable:$true] %s31
      %37 = dma.hbm_to_vmem [thread:$0]  %s30, 2048, %s32, [#allocation6], 128, 128, 8
    $region9: #{tpu_custom_call.1} parent=1 // pred_fallthru
      _
    // Predicated region
    $region10: #{tpu_custom_call.1} parent=1 // pred_check
      _
    $region11: #{tpu_custom_call.1} parent=1 // pred_check_branch
      %39 = sbr.rel (0) target = $region13
    $region12: #{tpu_custom_call.1} parent=1 // pred_region
      _
    $region13: #{tpu_custom_call.1} parent=1 // pred_fallthru
      _
    // Predicated region
    $region14: #{tpu_custom_call.1} parent=1 // pred_check
      _
    $region15: #{tpu_custom_call.1} parent=1 // pred_check_branch
      %41 = sbr.rel (0) target = $region17
    $region16: #{tpu_custom_call.1} parent=1 // pred_region
      %43 = dma.done [#allocation3], 128
    $region17: #{tpu_custom_call.1} parent=1 // pred_fallthru
      _
    // Predicated region
    $region18: #{tpu_custom_call.1} parent=1 // pred_check
      _
    $region19: #{tpu_custom_call.1} parent=1 // pred_check_branch
      %45 = sbr.rel (0) target = $region21
    $region20: #{tpu_custom_call.1} parent=1 // pred_region
      %47 = dma.done [#allocation6], 2048
    $region21: #{tpu_custom_call.1} parent=1 // pred_fallthru
      _
    %v48 = vld [vmem:[#allocation2] sm:$0xff]
    %v49 = vld [vmem:[#allocation5] sm:$0xff]
    %v50 = vld [vmem:[#allocation5 + $0x8] sm:$0xff]
    %v51 = vld [vmem:[#allocation5 + $0x10] sm:$0xff]
    %v52 = vld [vmem:[#allocation5 + $0x18] sm:$0xff]
    %v53 = vld [vmem:[#allocation5 + $0x20] sm:$0xff]
    %v54 = vld [vmem:[#allocation5 + $0x28] sm:$0xff]
    %v55 = vld [vmem:[#allocation5 + $0x30] sm:$0xff]
    %v56 = vld [vmem:[#allocation5 + $0x38] sm:$0xff]
    %v57 = vld [vmem:[#allocation5 + $0x40] sm:$0xff]
    %v58 = vld [vmem:[#allocation5 + $0x48] sm:$0xff]
    %v59 = vld [vmem:[#allocation5 + $0x50] sm:$0xff]
    %v60 = vld [vmem:[#allocation5 + $0x58] sm:$0xff]
    %v61 = vld [vmem:[#allocation5 + $0x60] sm:$0xff]
    %v62 = vld [vmem:[#allocation5 + $0x68] sm:$0xff]
    %v63 = vld [vmem:[#allocation5 + $0x70] sm:$0xff]
    %v64 = vld [vmem:[#allocation5 + $0x78] sm:$0xff]
    %65 = vmatpush.msra.mxu0 %v64
    %66 = vmatpush.msra.mxu0 %v63
    %67 = vmatpush.msra.mxu0 %v62
    %68 = vmatpush.msra.mxu0 %v61
    %69 = vmatpush.msra.mxu0 %v60
    %70 = vmatpush.msra.mxu0 %v59
    %71 = vmatpush.msra.mxu0 %v58
    %72 = vmatpush.msra.mxu0 %v57
    %73 = vmatpush.msra.mxu0 %v56
    %74 = vmatpush.msra.mxu0 %v55
    %75 = vmatpush.msra.mxu0 %v54
    %76 = vmatpush.msra.mxu0 %v53
    %77 = vmatpush.msra.mxu0 %v52
    %78 = vmatpush.msra.mxu0 %v51
    %79 = vmatpush.msra.mxu0 %v50
    %80 = vmatpush.msra.mxu0 %v49
    %81 = vmatmul.f32.gmra.mxu0 %v48
    %v82 = vpop.f32.mrf.mxu0
    %v83 = vadd.f32 0.0, %v82
    %84 = vdwg.mxu0
    %v85 = vld [vmem:[%s2] sm:$0x1]
    %v87 = vperm.slane %v85, 0
    %89 = vmatpush.xpose.msra.mxu0 %v64
    %90 = vmatpush.xpose.msra.mxu0 %v63
    %91 = vmatpush.xpose.msra.mxu0 %v62
    %92 = vmatpush.xpose.msra.mxu0 %v61
    %93 = vmatpush.xpose.msra.mxu0 %v60
    %94 = vmatpush.xpose.msra.mxu0 %v59
    %95 = vmatpush.xpose.msra.mxu0 %v58
    %96 = vmatpush.xpose.msra.mxu0 %v57
    %97 = vmatpush.xpose.msra.mxu0 %v56
    %98 = vmatpush.xpose.msra.mxu0 %v55
    %99 = vmatpush.xpose.msra.mxu0 %v54
    %100 = vmatpush.xpose.msra.mxu0 %v53
    %101 = vmatpush.xpose.msra.mxu0 %v52
    %102 = vmatpush.xpose.msra.mxu0 %v51
    %103 = vmatpush.xpose.msra.mxu0 %v50
    %104 = vmatpush.xpose.msra.mxu0 %v49
    %105 = vmatmul.f32.gmra.mxu0 %v83
    %v106 = vpop.f32.mrf.mxu0
    %v107 = vadd.f32 %v87, %v106
    %108 = vdwg.mxu0
    %vm109 = vcmp.ge.f32.partialorder %v107, 0.0
    %v110 = vmul.f32 %v107, 0.05
    %v111 = vsel %vm109, %v107, %v110
    %112 = vst [vmem:[#allocation7] sm:$0xff] %v111
    %113 = vst [vmem:[#allocation8] sm:$0xff] %v83
    // Predicated region
    $region22: #{tpu_custom_call.1} parent=1 // pred_check
      _
    $region23: #{tpu_custom_call.1} parent=1 // pred_check_branch
      %115 = sbr.rel (0) target = $region25
    $region24: #{tpu_custom_call.1} parent=1 // pred_region
      %117 = vsyncadd [#allocation4], 0
      %s119 = sshll.u32 [#allocation7], 4
      %s120 = int_to_ptr.vmem [resolvable:$true] %s119
      %s121 = sshll.u32 %s3, 4
      %s122 = int_to_ptr.hbm [resolvable:$true] %s121
      %124 = dma.vmem_to_hbm [thread:$0]  %s120, 128, %s122, [#allocation4]
    $region25: #{tpu_custom_call.1} parent=1 // pred_fallthru
      _
    // Predicated region
    $region26: #{tpu_custom_call.1} parent=1 // pred_check
      _
    $region27: #{tpu_custom_call.1} parent=1 // pred_check_branch
      %126 = sbr.rel (0) target = $region29
    $region28: #{tpu_custom_call.1} parent=1 // pred_region
      %128 = vsyncadd [#allocation9], 0
      %s130 = sshll.u32 [#allocation8], 4
      %s131 = int_to_ptr.vmem [resolvable:$true] %s130
      %s132 = sshll.u32 %s4, 4
      %s133 = int_to_ptr.hbm [resolvable:$true] %s132
      %135 = dma.vmem_to_hbm [thread:$0]  %s131, 128, %s133, [#allocation9]
    $region29: #{tpu_custom_call.1} parent=1 // pred_fallthru
      _
    // Predicated region
    $region30: #{tpu_custom_call.1} parent=1 // pred_check
      _
    $region31: #{tpu_custom_call.1} parent=1 // pred_check_branch
      %137 = sbr.rel (0) target = $region33
    $region32: #{tpu_custom_call.1} parent=1 // pred_region
      %139 = dma.done [#allocation4], 128
    $region33: #{tpu_custom_call.1} parent=1 // pred_fallthru
      _
    // Predicated region
    $region34: #{tpu_custom_call.1} parent=1 // pred_check
      _
    $region35: #{tpu_custom_call.1} parent=1 // pred_check_branch
      %141 = sbr.rel (0) target = $region37
    $region36: #{tpu_custom_call.1} parent=1 // pred_region
      %143 = dma.done [#allocation9], 128
    $region37: #{tpu_custom_call.1} parent=1 // pred_fallthru
      _
    %144 = vsyncpa [#allocation3], 1
    %145 = vsyncpa [#allocation6], 1
    %146 = vsyncpa [#allocation4], 1
    %147 = vsyncpa [#allocation9], 1

</llo_original>
